<compile_context>
chip_gen: v5e
topology: v5e:2x2
jax: 0.10.0
libtpu: 0.0.40
codegen_flags: <defaults>
</compile_context>

<pallas_src>
import functools

import jax
import jax.numpy as jnp
from jax.scipy.special import erf as _erf_ref
from jax.experimental import pallas as pl
from jax.experimental.pallas import tpu as pltpu


# ----------------------------------------------------------------------------
# In-kernel math
# ----------------------------------------------------------------------------
def _gelu_exact(x):
    # torch nn.GELU() default is the exact erf-based GELU.
    # TODO(synk): lax.erf lowering on Mosaic is not guaranteed, so erf is computed with the
    # Abramowitz & Stegun 7.1.26 polynomial (~1.5e-7 abs error in f32).
    z = x * 0.7071067811865476
    s = jnp.where(z >= 0.0, 1.0, -1.0)
    az = jnp.abs(z)
    # divide -> EUP slot (approx reciprocal), keeps the VALU path clear
    t = pl.reciprocal(1.0 + 0.3275911 * az, approx=True)
    poly = ((((1.061405429 * t - 1.453152027) * t + 1.421413741) * t
             - 0.284496736) * t + 0.254829592) * t
    erf_z = s * (1.0 - poly * jnp.exp(-az * az))
    return 0.5 * x * (1.0 + erf_z)


def _embed_kernel(x_ref, p_ref, o_ref, *, input_dim, emb_dim):
    # Packed parameter slab layout (rows):
    #   [0:Din]                w1  (Din, E)
    #   [Din]                  b1  (1, E)
    #   [Din+1:Din+1+E]        w2  (E, E)
    #   [Din+1+E]              b2  (1, E)
    x = x_ref[...]                                                  # (tm, Din)
    w1 = p_ref[0:input_dim, :]
    b1 = p_ref[input_dim:input_dim + 1, :]
    w2 = p_ref[input_dim + 1:input_dim + 1 + emb_dim, :]
    b2 = p_ref[input_dim + 1 + emb_dim:input_dim + 2 + emb_dim, :]

    h = jnp.dot(x, w1, preferred_element_type=jnp.float32) + b1     # Linear 1 (one matmul)
    h = _gelu_exact(h)                                              # GELU
    out = jnp.dot(h, w2, preferred_element_type=jnp.float32) + b2   # Linear 2 (one matmul)
    o_ref[...] = out.astype(o_ref.dtype)


# ----------------------------------------------------------------------------
# Wrapper
# ----------------------------------------------------------------------------
def embed_forward(x, w1, b1, w2, b2, *, block_rows=None):
    """Embed.forward: x.view(-1, Din) -> Linear -> GELU -> Linear -> unsqueeze(2).

    x : any shape whose elements flatten to (N, input_dim)   (matches x.view(-1, Din))
    w1: (input_dim, emb_dim)   b1: (emb_dim,)    [w1/w2 are torch linear.weight transposed]
    w2: (emb_dim, emb_dim)     b2: (emb_dim,)
    returns: (N, emb_dim, 1) float32
    """
    input_dim, emb_dim = w1.shape
    xf = x.reshape(-1, input_dim).astype(jnp.float32)
    n = xf.shape[0]

    # One lane-dense parameter slab -> single DMA, static slices inside the kernel.
    packed = jnp.concatenate(
        [w1.astype(jnp.float32),
         b1.reshape(1, emb_dim).astype(jnp.float32),
         w2.astype(jnp.float32),
         b2.reshape(1, emb_dim).astype(jnp.float32)],
        axis=0,
    )                                                               # (Din + 2 + E, E)

    if block_rows is None:
        block_rows = n if n <= 256 else 256
    pad = (-n) % block_rows
    if pad:
        xf = jnp.concatenate([xf, jnp.zeros((pad, input_dim), jnp.float32)], axis=0)
    n_pad = xf.shape[0]
    grid = (n_pad // block_rows,)

    kernel = functools.partial(_embed_kernel, input_dim=input_dim, emb_dim=emb_dim)
    out = pl.pallas_call(
        kernel,
        out_shape=jax.ShapeDtypeStruct((n_pad, emb_dim), jnp.float32),
        grid=grid,
        in_specs=[
            pl.BlockSpec((block_rows, input_dim), lambda i: (i, 0)),
            pl.BlockSpec(packed.shape, lambda i: (0, 0)),   # same block every step -> resident
        ],
        out_specs=pl.BlockSpec((block_rows, emb_dim), lambda i: (i, 0)),
        compiler_params=pltpu.CompilerParams(
            dimension_semantics=("parallel",),               # v7x: both TCs when grid > 1
        ),
    )(xf, packed)

    return out[:n, :, None]                                  # == torch .unsqueeze(2)


# ----------------------------------------------------------------------------
# Demo / self-check
# ----------------------------------------------------------------------------
if __name__ == "__main__":
    # Shapes consistent with ContextUnet's use of Embed: Embed(cond_dim=9, emb_dim=4*n_feat=32).
    BATCH, INPUT_DIM, EMB_DIM = 2, 9, 32

    key = jax.random.PRNGKey(0)
    kx, kw1, kb1, kw2, kb2 = jax.random.split(key, 5)
    x = jax.random.normal(kx, (BATCH, INPUT_DIM), jnp.float32)
    # torch nn.Linear stores weight as (out, in); here we hold the (in, out) transpose.
    w1 = 0.3 * jax.random.normal(kw1, (INPUT_DIM, EMB_DIM), jnp.float32)
    b1 = 0.1 * jax.random.normal(kb1, (EMB_DIM,), jnp.float32)
    w2 = 0.3 * jax.random.normal(kw2, (EMB_DIM, EMB_DIM), jnp.float32)
    b2 = 0.1 * jax.random.normal(kb2, (EMB_DIM,), jnp.float32)

    out = embed_forward(x, w1, b1, w2, b2)
    out = jax.block_until_ready(out)
    assert out.shape == (BATCH, EMB_DIM, 1) and out.dtype == jnp.float32
    assert bool(jnp.all(jnp.isfinite(out)))

    # Pure-JAX reference (exact erf-based GELU). Loose tolerance covers the in-kernel
    # polynomial erf + EUP approx-reciprocal approximations.
    h_ref = x.reshape(-1, INPUT_DIM) @ w1 + b1
    h_ref = 0.5 * h_ref * (1.0 + _erf_ref(h_ref * 0.7071067811865476))
    ref = (h_ref @ w2 + b2)[:, :, None]
    max_err = float(jnp.max(jnp.abs(out - ref)))
    assert max_err < 5e-3, f"mismatch vs reference: {max_err}"

    print("KERNEL_OK")
</pallas_src>

<mosaic_0001>
module attributes {stable_mosaic.version = 11 : i64} {
  func.func @_embed_kernel(%arg0: i32, %arg1: memref<2x9xf32, #tpu.memory_space<vmem>>, %arg2: memref<43x32xf32, #tpu.memory_space<vmem>>, %arg3: memref<2x32xf32, #tpu.memory_space<vmem>>) attributes {dimension_semantics = [#tpu.dimension_semantics<parallel>], iteration_bounds = array<i64: 1>, scalar_prefetch = 0 : i64, scratch_operands = 0 : i64, tpu.core_type = #tpu.core_type<tc>, window_params = [{transform_indices = @transform_0, window_bounds = array<i64: 2, 9>}, {pipeline_mode = #tpu.pipeline_mode<synchronous>, transform_indices = @transform_1, window_bounds = array<i64: 43, 32>}, {transform_indices = @transform_2, window_bounds = array<i64: 2, 32>}]} {
    %c0 = arith.constant 0 : index
    %c0_0 = arith.constant 0 : index
    %0 = vector.load %arg1[%c0, %c0_0] : memref<2x9xf32, #tpu.memory_space<vmem>>, vector<2x9xf32>
    %c0_1 = arith.constant 0 : index
    %c0_2 = arith.constant 0 : index
    %1 = vector.load %arg2[%c0_1, %c0_2] : memref<43x32xf32, #tpu.memory_space<vmem>>, vector<9x32xf32>
    %c9 = arith.constant 9 : index
    %c0_3 = arith.constant 0 : index
    %2 = vector.load %arg2[%c9, %c0_3] : memref<43x32xf32, #tpu.memory_space<vmem>>, vector<1x32xf32>
    %c10 = arith.constant 10 : index
    %c0_4 = arith.constant 0 : index
    %3 = vector.load %arg2[%c10, %c0_4] : memref<43x32xf32, #tpu.memory_space<vmem>>, vector<32x32xf32>
    %c42 = arith.constant 42 : index
    %c0_5 = arith.constant 0 : index
    %4 = vector.load %arg2[%c42, %c0_5] : memref<43x32xf32, #tpu.memory_space<vmem>>, vector<1x32xf32>
    %cst = arith.constant dense<0.000000e+00> : vector<2x32xf32>
    %5 = tpu.matmul %0, %1, %cst {dimension_numbers = #tpu.dot_dimension_numbers<[1], [0], [0], [1], [0, 0, 1, 1], [], []>} : vector<2x9xf32>, vector<9x32xf32>, vector<2x32xf32> -> vector<2x32xf32>
    %6 = vector.broadcast %2 : vector<1x32xf32> to vector<2x32xf32>
    %7 = arith.addf %5, %6 : vector<2x32xf32>
    %cst_6 = arith.constant 0.707106769 : f32
    %8 = vector.broadcast %cst_6 : f32 to vector<2x32xf32>
    %9 = arith.mulf %7, %8 : vector<2x32xf32>
    %cst_7 = arith.constant 0.000000e+00 : f32
    %10 = vector.broadcast %cst_7 : f32 to vector<2x32xf32>
    %11 = arith.cmpf oge, %9, %10 : vector<2x32xf32>
    %cst_8 = arith.constant 1.000000e+00 : f32
    %cst_9 = arith.constant -1.000000e+00 : f32
    %12 = vector.broadcast %cst_8 : f32 to vector<2x32xf32>
    %13 = vector.broadcast %cst_9 : f32 to vector<2x32xf32>
    %14 = arith.select %11, %12, %13 : vector<2x32xi1>, vector<2x32xf32>
    %15 = math.absf %9 : vector<2x32xf32>
    %cst_10 = arith.constant 0.327591091 : f32
    %16 = vector.broadcast %cst_10 : f32 to vector<2x32xf32>
    %17 = arith.mulf %16, %15 : vector<2x32xf32>
    %cst_11 = arith.constant 1.000000e+00 : f32
    %18 = vector.broadcast %cst_11 : f32 to vector<2x32xf32>
    %19 = arith.addf %18, %17 : vector<2x32xf32>
    %20 = tpu.reciprocal %19 {approx = true} : vector<2x32xf32> -> vector<2x32xf32>
    %cst_12 = arith.constant 1.06140542 : f32
    %21 = vector.broadcast %cst_12 : f32 to vector<2x32xf32>
    %22 = arith.mulf %21, %20 : vector<2x32xf32>
    %cst_13 = arith.constant 1.45315206 : f32
    %23 = vector.broadcast %cst_13 : f32 to vector<2x32xf32>
    %24 = arith.subf %22, %23 : vector<2x32xf32>
    %25 = arith.mulf %24, %20 : vector<2x32xf32>
    %cst_14 = arith.constant 1.42141378 : f32
    %26 = vector.broadcast %cst_14 : f32 to vector<2x32xf32>
    %27 = arith.addf %25, %26 : vector<2x32xf32>
    %28 = arith.mulf %27, %20 : vector<2x32xf32>
    %cst_15 = arith.constant 0.284496725 : f32
    %29 = vector.broadcast %cst_15 : f32 to vector<2x32xf32>
    %30 = arith.subf %28, %29 : vector<2x32xf32>
    %31 = arith.mulf %30, %20 : vector<2x32xf32>
    %cst_16 = arith.constant 0.254829586 : f32
    %32 = vector.broadcast %cst_16 : f32 to vector<2x32xf32>
    %33 = arith.addf %31, %32 : vector<2x32xf32>
    %34 = arith.mulf %33, %20 : vector<2x32xf32>
    %cst_17 = arith.constant 0.000000e+00 : f32
    %35 = vector.broadcast %cst_17 : f32 to vector<2x32xf32>
    %36 = arith.subf %35, %15 : vector<2x32xf32>
    %37 = arith.mulf %36, %15 : vector<2x32xf32>
    %38 = math.exp %37 : vector<2x32xf32>
    %39 = arith.mulf %34, %38 : vector<2x32xf32>
    %cst_18 = arith.constant 1.000000e+00 : f32
    %40 = vector.broadcast %cst_18 : f32 to vector<2x32xf32>
    %41 = arith.subf %40, %39 : vector<2x32xf32>
    %42 = arith.mulf %14, %41 : vector<2x32xf32>
    %cst_19 = arith.constant 5.000000e-01 : f32
    %43 = vector.broadcast %cst_19 : f32 to vector<2x32xf32>
    %44 = arith.mulf %43, %7 : vector<2x32xf32>
    %cst_20 = arith.constant 1.000000e+00 : f32
    %45 = vector.broadcast %cst_20 : f32 to vector<2x32xf32>
    %46 = arith.addf %45, %42 : vector<2x32xf32>
    %47 = arith.mulf %44, %46 : vector<2x32xf32>
    %cst_21 = arith.constant dense<0.000000e+00> : vector<2x32xf32>
    %48 = tpu.matmul %47, %3, %cst_21 {dimension_numbers = #tpu.dot_dimension_numbers<[1], [0], [0], [1], [0, 0, 1, 1], [], []>} : vector<2x32xf32>, vector<32x32xf32>, vector<2x32xf32> -> vector<2x32xf32>
    %49 = vector.broadcast %4 : vector<1x32xf32> to vector<2x32xf32>
    %50 = arith.addf %48, %49 : vector<2x32xf32>
    %c0_22 = arith.constant 0 : index
    %c0_23 = arith.constant 0 : index
    %51 = vector.load %arg3[%c0_22, %c0_23] : memref<2x32xf32, #tpu.memory_space<vmem>>, vector<2x32xf32>
    tpu.vector_store %arg3[%c0_22, %c0_23], %50 {strides = array<i32>} : memref<2x32xf32, #tpu.memory_space<vmem>>, vector<2x32xf32>,
    return
  }
  func.func @transform_0(%arg0: i32) -> (i32, i32) {
    %c0_i32 = arith.constant 0 : i32
    %c0_i32_0 = arith.constant 0 : i32
    return %arg0, %c0_i32 : i32, i32
  }
  func.func @transform_1(%arg0: i32) -> (i32, i32) {
    %c0_i32 = arith.constant 0 : i32
    %c0_i32_0 = arith.constant 0 : i32
    %c0_i32_1 = arith.constant 0 : i32
    return %c0_i32, %c0_i32_0 : i32, i32
  }
  func.func @transform_2(%arg0: i32) -> (i32, i32) {
    %c0_i32 = arith.constant 0 : i32
    %c0_i32_0 = arith.constant 0 : i32
    return %arg0, %c0_i32 : i32, i32
  }
}

</mosaic_0001>

<llo_original>
// kernel: tpu_custom_call.1
$region0: #{tpu_custom_call.1}
  #allocation0 [shape = 'u32[]', space=smem, size = 0x4, offset = 0x4, fixed_abs, tag = 'smem constant byte address 0x4 - core index']
  #allocation1 [shape = 'u32[72,128]{1,0:T(1,128)}', space=vmem, size = 0x9000, scoped, tag = 'internal scratch']
  %s0 = inlined_call_operand.vmem [shape: f32[2,9], index: 0, kind: input, shape index: {}]
  %s1 = inlined_call_operand.vmem [shape: f32[43,32], index: 1, kind: input, shape index: {}]
  %s2 = inlined_call_operand.hbm [shape: f32[2,32], index: 2, kind: output, shape index: {}]
  %s3 = sld [smem:[#allocation0]]
  $region18: #{tpu_custom_call.1} parent=0
    _
  %s5 = ssub.s32 1, %s3
  %s6 = scalar_select 0, %s5, %s3
  $region1: #{tpu_custom_call.1} parent=0
    #allocation2 [shape = 'u8[1024]{0}', space=vmem, size = 0x400, scoped, tag = 'output window, operand 0, single buffered']
    #allocation3 [shape = 's32[1]{0}', space=sflag, size = 0x4, scoped, tag = 'scoped memory for tpu_custom_call.1']
    %7 = vsyncpa [#allocation3], 0
    // Predicated region
    $region2: #{tpu_custom_call.1} parent=1 // pred_check
      _
    $region3: #{tpu_custom_call.1} parent=1 // pred_check_branch
      %9 = sbr.rel (0) target = $region5
    $region4: #{tpu_custom_call.1} parent=1 // pred_region
      _
    $region5: #{tpu_custom_call.1} parent=1 // pred_fallthru
      _
    // Predicated region
    $region6: #{tpu_custom_call.1} parent=1 // pred_check
      _
    $region7: #{tpu_custom_call.1} parent=1 // pred_check_branch
      %11 = sbr.rel (0) target = $region9
    $region8: #{tpu_custom_call.1} parent=1 // pred_region
      _
    $region9: #{tpu_custom_call.1} parent=1 // pred_fallthru
      _
    %v12 = vld [vmem:[%s0] sm:$0x3]
    %v13 = vld [vmem:[%s1] sm:$0xff]
    %v14 = vld [vmem:[%s1 + $0x8] sm:$0x1]
    %v15 = vld [vmem:[%s1 + $0x9] sm:$0x1]
    %v16 = vld [vmem:[%s1 + $0xa] sm:$0xff]
    %v17 = vld [vmem:[%s1 + $0x12] sm:$0xff]
    %v18 = vld [vmem:[%s1 + $0x1a] sm:$0xff]
    %v19 = vld [vmem:[%s1 + $0x22] sm:$0xff]
    %v20 = vld [vmem:[%s1 + $0x2a] sm:$0x1]
    %v21 = vperm.slane %v15, 0
    %vm22 = vcmask 72704
    %v24 = vsel %vm22, %v12, 0
    %vm26 = vcmask 1040384
    %v28 = vsel %vm26, %v14, 0
    %30 = vmatpush.msra.mxu0 0.0
    %31 = vmatpush.msra.mxu0 0.0
    %32 = vmatpush.msra.mxu0 0.0
    %33 = vmatpush.msra.mxu0 0.0
    %34 = vmatpush.msra.mxu0 0.0
    %35 = vmatpush.msra.mxu0 0.0
    %36 = vmatpush.msra.mxu0 0.0
    %37 = vmatpush.msra.mxu0 0.0
    %38 = vmatpush.msra.mxu0 0.0
    %39 = vmatpush.msra.mxu0 0.0
    %40 = vmatpush.msra.mxu0 0.0
    %41 = vmatpush.msra.mxu0 0.0
    %42 = vmatpush.msra.mxu0 0.0
    %43 = vmatpush.msra.mxu0 0.0
    %44 = vmatpush.msra.mxu0 %v28
    %45 = vmatpush.msra.mxu0 %v13
    %46 = vmatmul.f32.gmra.mxu0 %v24
    %v47 = vpop.f32.mrf.mxu0
    %v48 = vadd.f32 %v21, %v47
    %49 = vdwg.mxu0
    %v50 = vmul.f32 %v48, 0.70710677
    %vm51 = vcmp.ge.f32.partialorder %v50, 0.0
    %v52 = vsel %vm51, 1.0, -1.0
    %v53 = vand.u32 2147483647, %v50
    %v54 = vmul.f32 %v53, 0.3275911
    %v55 = vadd.f32 %v54, 1.0
    %v56 = vrcp.pop %v55
    %v57 = vmul.f32 %v56, 1.0614054
    %v58 = vsub.f32 %v57, 1.4531521
    %v59 = vmul.f32 %v58, %v56
    %v60 = vadd.f32 %v59, 1.4214138
    %v61 = vmul.f32 %v60, %v56
    %v62 = vsub.f32 %v61, 0.28449672
    %v63 = vmul.f32 %v62, %v56
    %v64 = vadd.f32 %v63, 0.2548296
    %v65 = vmul.f32 %v64, %v56
    %v66 = vsub.f32 0.0, %v53
    %v67 = vmul.f32 %v66, %v53
    %v68 = vmul.f32 %v67, 1.442695
    %v69 = vpow.pop %v68
    %v70 = vmul.f32 %v65, %v69
    %v71 = vsub.f32 1.0, %v70
    %v72 = vmul.f32 %v52, %v71
    %v73 = vmul.f32 %v48, 0.5
    %v74 = vadd.f32 %v72, 1.0
    %v75 = vmul.f32 %v73, %v74
    %v76 = vperm.slane %v20, 0
    %vm77 = vcmask 261120
    %v79 = vsel %vm77, %v75, 0
    %81 = vmatpush.msra.mxu0 0.0
    %82 = vmatpush.msra.mxu0 0.0
    %83 = vmatpush.msra.mxu0 0.0
    %84 = vmatpush.msra.mxu0 0.0
    %85 = vmatpush.msra.mxu0 0.0
    %86 = vmatpush.msra.mxu0 0.0
    %87 = vmatpush.msra.mxu0 0.0
    %88 = vmatpush.msra.mxu0 0.0
    %89 = vmatpush.msra.mxu0 0.0
    %90 = vmatpush.msra.mxu0 0.0
    %91 = vmatpush.msra.mxu0 0.0
    %92 = vmatpush.msra.mxu0 0.0
    %93 = vmatpush.msra.mxu0 %v19
    %94 = vmatpush.msra.mxu0 %v18
    %95 = vmatpush.msra.mxu0 %v17
    %96 = vmatpush.msra.mxu0 %v16
    %97 = vmatmul.f32.gmra.mxu0 %v79
    %v98 = vpop.f32.mrf.mxu0
    %v99 = vadd.f32 %v76, %v98
    %100 = vdwg.mxu0
    %vm101 = vcmask 254976
    %102 = vst.msk [vmem:[#allocation2] sm:$0x3] %vm101, %v99
    // Predicated region
    $region10: #{tpu_custom_call.1} parent=1 // pred_check
      _
    $region11: #{tpu_custom_call.1} parent=1 // pred_check_branch
      %104 = sbr.rel (0) target = $region13
    $region12: #{tpu_custom_call.1} parent=1 // pred_region
      %106 = vsyncadd [#allocation3], 0
      %s108 = sshll.u32 [#allocation2], 4
      %s109 = int_to_ptr.vmem [resolvable:$true] %s108
      %s110 = sshll.u32 %s2, 4
      %s111 = int_to_ptr.hbm [resolvable:$true] %s110
      %113 = dma.vmem_to_hbm [thread:$0]  %s109, 32, %s111, [#allocation3]
    $region13: #{tpu_custom_call.1} parent=1 // pred_fallthru
      _
    // Predicated region
    $region14: #{tpu_custom_call.1} parent=1 // pred_check
      _
    $region15: #{tpu_custom_call.1} parent=1 // pred_check_branch
      %115 = sbr.rel (0) target = $region17
    $region16: #{tpu_custom_call.1} parent=1 // pred_region
      %117 = dma.done [#allocation3], 32
    $region17: #{tpu_custom_call.1} parent=1 // pred_fallthru
      _
    %118 = vsyncpa [#allocation3], 1

</llo_original>
